<compile_context>
chip_gen: v5e
topology: v5e:2x2
jax: 0.10.0
libtpu: 0.0.40
codegen_flags: <defaults>
</compile_context>

<pallas_src>
import jax
import jax.numpy as jnp
from jax.experimental import pallas as pl
from jax.experimental.pallas import tpu as pltpu


_LANES = 128   # TPU lane width
_H1 = 256      # fc1 output features
_H2 = 32       # fc2 output features (lane-padded to 128 inside the kernel)
_OUT = 2       # fc3 output features (lane-padded to 128 inside the kernel)


def _round_up(x, m):
    return (x + m - 1) // m * m


def _mlp_kernel(x_ref, w1_ref, b1_ref, w2_ref, b2_ref, w3_ref, b3_ref, o_ref):
    # fc1 + ReLU: bf16 operands, f32 accumulation, f32 epilogue.
    h1 = jnp.dot(x_ref[...], w1_ref[...], preferred_element_type=jnp.float32)
    h1 = jnp.maximum(h1 + b1_ref[...], 0.0)
    # fc2 + ReLU. Output is lane-padded to 128; padded bias columns are 0, so the
    # padded activations are exactly 0 after ReLU.
    h2 = jnp.dot(h1.astype(jnp.bfloat16), w2_ref[...],
                 preferred_element_type=jnp.float32)
    h2 = jnp.maximum(h2 + b2_ref[...], 0.0)
    # fc3 (lane-padded output; padded rows of w3 are 0 so padding never leaks).
    out = jnp.dot(h2.astype(jnp.bfloat16), w3_ref[...],
                  preferred_element_type=jnp.float32) + b3_ref[...]
    o_ref[...] = out.astype(o_ref.dtype)


@jax.jit
def net_l2_forward(x_nchw, w1, b1, w2, b2, w3, b3):
    """Forward pass of Net_L2.

    x_nchw: [B, C, H, W] float32
    w1: [inputSize, 256], b1: [256]
    w2: [256, 32],        b2: [32]
    w3: [32, 2],          b3: [2]
    returns: [B, 2] float32
    """
    B = x_nchw.shape[0]
    x = x_nchw.reshape(B, -1).astype(jnp.float32)   # torch.flatten(x, 1)
    in_features = x.shape[1]

    # Batch tile: multiple of 16 rows (bf16 sublane packing), capped at 512 so the
    # double-buffered x tile (~1 MiB bf16) + resident weights (~0.7 MiB) stay well
    # under the default scoped VMEM limit on v5e/v6e/v7x.
    TM = _round_up(B, 16) if B <= 512 else 512
    B_pad = _round_up(B, TM)
    if B_pad != B:
        x = jnp.pad(x, ((0, B_pad - B), (0, 0)))

    # bf16 matmul operands, zero lane-padding for the narrow fc2/fc3 dims.
    x_bf = x.astype(jnp.bfloat16)
    w1_bf = w1.astype(jnp.bfloat16)
    w2_pad = jnp.zeros((_H1, _LANES), jnp.bfloat16).at[:, :_H2].set(
        w2.astype(jnp.bfloat16))
    w3_pad = jnp.zeros((_LANES, _LANES), jnp.bfloat16).at[:_H2, :_OUT].set(
        w3.astype(jnp.bfloat16))
    b1_2d = b1.reshape(1, _H1).astype(jnp.float32)
    b2_pad = jnp.zeros((1, _LANES), jnp.float32).at[:, :_H2].set(
        b2.astype(jnp.float32))
    b3_pad = jnp.zeros((1, _LANES), jnp.float32).at[:, :_OUT].set(
        b3.astype(jnp.float32))

    grid = (B_pad // TM,)

    # Weights / biases: constant index_map -> VMEM-resident across batch tiles.
    def resident(shape):
        return pl.BlockSpec(shape, lambda i: (0, 0))

    in_specs = [
        pl.BlockSpec((TM, in_features), lambda i: (i, 0)),   # x tile
        resident((in_features, _H1)),                        # w1
        resident((1, _H1)),                                  # b1
        resident((_H1, _LANES)),                             # w2 (lane-padded)
        resident((1, _LANES)),                               # b2 (lane-padded)
        resident((_LANES, _LANES)),                          # w3 (lane-padded)
        resident((1, _LANES)),                               # b3 (lane-padded)
    ]
    out_spec = pl.BlockSpec((TM, _LANES), lambda i: (i, 0))

    flops = 2 * B_pad * (in_features * _H1 + _H1 * _LANES + _LANES * _LANES)
    bytes_accessed = (
        x_bf.size * 2 + w1_bf.size * 2 + w2_pad.size * 2 + w3_pad.size * 2
        + (b1_2d.size + b2_pad.size + b3_pad.size) * 4
        + B_pad * _LANES * 4)

    out_padded = pl.pallas_call(
        _mlp_kernel,
        out_shape=jax.ShapeDtypeStruct((B_pad, _LANES), jnp.float32),
        grid=grid,
        in_specs=in_specs,
        out_specs=out_spec,
        compiler_params=pltpu.CompilerParams(
            dimension_semantics=("parallel",)),
        cost_estimate=pl.CostEstimate(
            flops=flops, transcendentals=0, bytes_accessed=bytes_accessed),
    )(x_bf, w1_bf, b1_2d, w2_pad, b2_pad, w3_pad, b3_pad)

    # Strip batch padding and lane padding back to the logical [B, 2] result.
    return out_padded[:B, :_OUT]


def init_params(key, input_size):
    """Deterministic PyTorch-style init: U(-1/sqrt(fan_in), 1/sqrt(fan_in)).

    Weights are stored as [in_features, out_features] (transpose of nn.Linear).
    """
    dims = [(input_size, _H1), (_H1, _H2), (_H2, _OUT)]
    params = []
    for (fan_in, fan_out) in dims:
        key, kw, kb = jax.random.split(key, 3)
        bound = 1.0 / jnp.sqrt(jnp.float32(fan_in))
        w = jax.random.uniform(kw, (fan_in, fan_out), jnp.float32, -bound, bound)
        b = jax.random.uniform(kb, (fan_out,), jnp.float32, -bound, bound)
        params.extend([w, b])
    return params


def reference_forward(x_nchw, w1, b1, w2, b2, w3, b3):
    # Pure-JAX f32 reference for sanity checking.
    x = x_nchw.reshape(x_nchw.shape[0], -1).astype(jnp.float32)
    h1 = jnp.maximum(x @ w1 + b1, 0.0)
    h2 = jnp.maximum(h1 @ w2 + b2, 0.0)
    return h2 @ w3 + b3


if __name__ == "__main__":
    key = jax.random.PRNGKey(0)
    kx, kp = jax.random.split(key)

    # Small example shapes consistent with the module: NCHW input, flattened.
    B, C, H, W = 2, 4, 16, 16
    input_size = C * H * W  # 1024

    x = jax.random.normal(kx, (B, C, H, W), jnp.float32)
    w1, b1, w2, b2, w3, b3 = init_params(kp, input_size)

    out = net_l2_forward(x, w1, b1, w2, b2, w3, b3)
    out = jax.block_until_ready(out)

    ref = reference_forward(x, w1, b1, w2, b2, w3, b3)
    assert out.shape == (B, 2)
    # bf16 matmul operands with f32 accumulation: relaxed tolerance vs f32 ref.
    assert jnp.allclose(out, ref, atol=3e-2, rtol=3e-2), "mismatch vs JAX reference"

    print("KERNEL_OK")
</pallas_src>

<mosaic_0001>
module attributes {stable_mosaic.version = 11 : i64} {
  func.func @_mlp_kernel(%arg0: i32, %arg1: memref<16x1024xbf16, #tpu.memory_space<vmem>>, %arg2: memref<1024x256xbf16, #tpu.memory_space<vmem>>, %arg3: memref<1x256xf32, #tpu.memory_space<vmem>>, %arg4: memref<256x128xbf16, #tpu.memory_space<vmem>>, %arg5: memref<1x128xf32, #tpu.memory_space<vmem>>, %arg6: memref<128x128xbf16, #tpu.memory_space<vmem>>, %arg7: memref<1x128xf32, #tpu.memory_space<vmem>>, %arg8: memref<16x128xf32, #tpu.memory_space<vmem>>) attributes {dimension_semantics = [#tpu.dimension_semantics<parallel>], iteration_bounds = array<i64: 1>, scalar_prefetch = 0 : i64, scratch_operands = 0 : i64, tpu.core_type = #tpu.core_type<tc>, window_params = [{transform_indices = @transform_0, window_bounds = array<i64: 16, 1024>}, {pipeline_mode = #tpu.pipeline_mode<synchronous>, transform_indices = @transform_1, window_bounds = array<i64: 1024, 256>}, {pipeline_mode = #tpu.pipeline_mode<synchronous>, transform_indices = @transform_2, window_bounds = array<i64: 1, 256>}, {pipeline_mode = #tpu.pipeline_mode<synchronous>, transform_indices = @transform_3, window_bounds = array<i64: 256, 128>}, {pipeline_mode = #tpu.pipeline_mode<synchronous>, transform_indices = @transform_4, window_bounds = array<i64: 1, 128>}, {pipeline_mode = #tpu.pipeline_mode<synchronous>, transform_indices = @transform_5, window_bounds = array<i64: 128, 128>}, {pipeline_mode = #tpu.pipeline_mode<synchronous>, transform_indices = @transform_6, window_bounds = array<i64: 1, 128>}, {transform_indices = @transform_7, window_bounds = array<i64: 16, 128>}]} {
    %c0 = arith.constant 0 : index
    %c0_0 = arith.constant 0 : index
    %0 = vector.load %arg1[%c0, %c0_0] : memref<16x1024xbf16, #tpu.memory_space<vmem>>, vector<16x1024xbf16>
    %c0_1 = arith.constant 0 : index
    %c0_2 = arith.constant 0 : index
    %1 = vector.load %arg2[%c0_1, %c0_2] : memref<1024x256xbf16, #tpu.memory_space<vmem>>, vector<1024x256xbf16>
    %cst = arith.constant dense<0.000000e+00> : vector<16x256xf32>
    %2 = tpu.matmul %0, %1, %cst {dimension_numbers = #tpu.dot_dimension_numbers<[1], [0], [0], [1], [0, 0, 1, 1], [], []>} : vector<16x1024xbf16>, vector<1024x256xbf16>, vector<16x256xf32> -> vector<16x256xf32>
    %c0_3 = arith.constant 0 : index
    %c0_4 = arith.constant 0 : index
    %3 = vector.load %arg3[%c0_3, %c0_4] : memref<1x256xf32, #tpu.memory_space<vmem>>, vector<1x256xf32>
    %4 = vector.broadcast %3 : vector<1x256xf32> to vector<16x256xf32>
    %5 = arith.addf %2, %4 : vector<16x256xf32>
    %cst_5 = arith.constant 0.000000e+00 : f32
    %6 = vector.broadcast %cst_5 : f32 to vector<16x256xf32>
    %7 = arith.maximumf %5, %6 : vector<16x256xf32>
    %8 = arith.truncf %7 : vector<16x256xf32> to vector<16x256xbf16>
    %c0_6 = arith.constant 0 : index
    %c0_7 = arith.constant 0 : index
    %9 = vector.load %arg4[%c0_6, %c0_7] : memref<256x128xbf16, #tpu.memory_space<vmem>>, vector<256x128xbf16>
    %cst_8 = arith.constant dense<0.000000e+00> : vector<16x128xf32>
    %10 = tpu.matmul %8, %9, %cst_8 {dimension_numbers = #tpu.dot_dimension_numbers<[1], [0], [0], [1], [0, 0, 1, 1], [], []>} : vector<16x256xbf16>, vector<256x128xbf16>, vector<16x128xf32> -> vector<16x128xf32>
    %c0_9 = arith.constant 0 : index
    %c0_10 = arith.constant 0 : index
    %11 = vector.load %arg5[%c0_9, %c0_10] : memref<1x128xf32, #tpu.memory_space<vmem>>, vector<1x128xf32>
    %12 = vector.broadcast %11 : vector<1x128xf32> to vector<16x128xf32>
    %13 = arith.addf %10, %12 : vector<16x128xf32>
    %cst_11 = arith.constant 0.000000e+00 : f32
    %14 = vector.broadcast %cst_11 : f32 to vector<16x128xf32>
    %15 = arith.maximumf %13, %14 : vector<16x128xf32>
    %16 = arith.truncf %15 : vector<16x128xf32> to vector<16x128xbf16>
    %c0_12 = arith.constant 0 : index
    %c0_13 = arith.constant 0 : index
    %17 = vector.load %arg6[%c0_12, %c0_13] : memref<128x128xbf16, #tpu.memory_space<vmem>>, vector<128x128xbf16>
    %cst_14 = arith.constant dense<0.000000e+00> : vector<16x128xf32>
    %18 = tpu.matmul %16, %17, %cst_14 {dimension_numbers = #tpu.dot_dimension_numbers<[1], [0], [0], [1], [0, 0, 1, 1], [], []>} : vector<16x128xbf16>, vector<128x128xbf16>, vector<16x128xf32> -> vector<16x128xf32>
    %c0_15 = arith.constant 0 : index
    %c0_16 = arith.constant 0 : index
    %19 = vector.load %arg7[%c0_15, %c0_16] : memref<1x128xf32, #tpu.memory_space<vmem>>, vector<1x128xf32>
    %20 = vector.broadcast %19 : vector<1x128xf32> to vector<16x128xf32>
    %21 = arith.addf %18, %20 : vector<16x128xf32>
    %c0_17 = arith.constant 0 : index
    %c0_18 = arith.constant 0 : index
    %22 = vector.load %arg8[%c0_17, %c0_18] : memref<16x128xf32, #tpu.memory_space<vmem>>, vector<16x128xf32>
    tpu.vector_store %arg8[%c0_17, %c0_18], %21 {strides = array<i32>} : memref<16x128xf32, #tpu.memory_space<vmem>>, vector<16x128xf32>,
    return
  }
  func.func @transform_0(%arg0: i32) -> (i32, i32) {
    %c0_i32 = arith.constant 0 : i32
    %c0_i32_0 = arith.constant 0 : i32
    return %arg0, %c0_i32 : i32, i32
  }
  func.func @transform_1(%arg0: i32) -> (i32, i32) {
    %c0_i32 = arith.constant 0 : i32
    %c0_i32_0 = arith.constant 0 : i32
    %c0_i32_1 = arith.constant 0 : i32
    return %c0_i32, %c0_i32_0 : i32, i32
  }
  func.func @transform_2(%arg0: i32) -> (i32, i32) {
    %c0_i32 = arith.constant 0 : i32
    %c0_i32_0 = arith.constant 0 : i32
    %c0_i32_1 = arith.constant 0 : i32
    return %c0_i32, %c0_i32_0 : i32, i32
  }
  func.func @transform_3(%arg0: i32) -> (i32, i32) {
    %c0_i32 = arith.constant 0 : i32
    %c0_i32_0 = arith.constant 0 : i32
    %c0_i32_1 = arith.constant 0 : i32
    return %c0_i32, %c0_i32_0 : i32, i32
  }
  func.func @transform_4(%arg0: i32) -> (i32, i32) {
    %c0_i32 = arith.constant 0 : i32
    %c0_i32_0 = arith.constant 0 : i32
    %c0_i32_1 = arith.constant 0 : i32
    return %c0_i32, %c0_i32_0 : i32, i32
  }
  func.func @transform_5(%arg0: i32) -> (i32, i32) {
    %c0_i32 = arith.constant 0 : i32
    %c0_i32_0 = arith.constant 0 : i32
    %c0_i32_1 = arith.constant 0 : i32
    return %c0_i32, %c0_i32_0 : i32, i32
  }
  func.func @transform_6(%arg0: i32) -> (i32, i32) {
    %c0_i32 = arith.constant 0 : i32
    %c0_i32_0 = arith.constant 0 : i32
    %c0_i32_1 = arith.constant 0 : i32
    return %c0_i32, %c0_i32_0 : i32, i32
  }
  func.func @transform_7(%arg0: i32) -> (i32, i32) {
    %c0_i32 = arith.constant 0 : i32
    %c0_i32_0 = arith.constant 0 : i32
    return %arg0, %c0_i32 : i32, i32
  }
}

</mosaic_0001>

<llo_original>
// kernel: net_l2_forward.1
$region0: #{net_l2_forward.1}
  #allocation0 [shape = 'u32[]', space=smem, size = 0x4, offset = 0x4, fixed_abs, tag = 'smem constant byte address 0x4 - core index']
  #allocation1 [shape = 'u32[72,128]{1,0:T(1,128)}', space=vmem, size = 0x9000, scoped, tag = 'internal scratch']
  %s0 = inlined_call_operand.vmem [shape: bf16[16,1024], index: 0, kind: input, shape index: {}]
  %s1 = inlined_call_operand.vmem [shape: bf16[1024,256], index: 1, kind: input, shape index: {}]
  %s2 = inlined_call_operand.vmem [shape: f32[1,256], index: 2, kind: input, shape index: {}]
  %s3 = inlined_call_operand.vmem [shape: bf16[256,128], index: 3, kind: input, shape index: {}]
  %s4 = inlined_call_operand.vmem [shape: f32[1,128], index: 4, kind: input, shape index: {}]
  %s5 = inlined_call_operand.vmem [shape: bf16[128,128], index: 5, kind: input, shape index: {}]
  %s6 = inlined_call_operand.vmem [shape: f32[1,128], index: 6, kind: input, shape index: {}]
  %s7 = inlined_call_operand.vmem [shape: f32[16,128], index: 7, kind: output, shape index: {}]
  %s8 = sld [smem:[#allocation0]]
  $region38: #{net_l2_forward.1} parent=0
    _
  %s10 = ssub.s32 1, %s8
  %s11 = scalar_select 0, %s10, %s8
  // Predicated region
  $region2: #{net_l2_forward.1} parent=0 // pred_check
    _
  $region3: #{net_l2_forward.1} parent=0 // pred_check_branch
    %13 = sbr.rel (0) target = $region5
  $region4: #{net_l2_forward.1} parent=0 // pred_region
    _
  $region5: #{net_l2_forward.1} parent=0 // pred_fallthru
    _
  // Predicated region
  $region6: #{net_l2_forward.1} parent=0 // pred_check
    _
  $region7: #{net_l2_forward.1} parent=0 // pred_check_branch
    %15 = sbr.rel (0) target = $region9
  $region8: #{net_l2_forward.1} parent=0 // pred_region
    _
  $region9: #{net_l2_forward.1} parent=0 // pred_fallthru
    _
  // Predicated region
  $region10: #{net_l2_forward.1} parent=0 // pred_check
    _
  $region11: #{net_l2_forward.1} parent=0 // pred_check_branch
    %17 = sbr.rel (0) target = $region13
  $region12: #{net_l2_forward.1} parent=0 // pred_region
    _
  $region13: #{net_l2_forward.1} parent=0 // pred_fallthru
    _
  // Predicated region
  $region14: #{net_l2_forward.1} parent=0 // pred_check
    _
  $region15: #{net_l2_forward.1} parent=0 // pred_check_branch
    %19 = sbr.rel (0) target = $region17
  $region16: #{net_l2_forward.1} parent=0 // pred_region
    _
  $region17: #{net_l2_forward.1} parent=0 // pred_fallthru
    _
  // Predicated region
  $region18: #{net_l2_forward.1} parent=0 // pred_check
    _
  $region19: #{net_l2_forward.1} parent=0 // pred_check_branch
    %21 = sbr.rel (0) target = $region21
  $region20: #{net_l2_forward.1} parent=0 // pred_region
    _
  $region21: #{net_l2_forward.1} parent=0 // pred_fallthru
    _
  // Predicated region
  $region22: #{net_l2_forward.1} parent=0 // pred_check
    _
  $region23: #{net_l2_forward.1} parent=0 // pred_check_branch
    %23 = sbr.rel (0) target = $region25
  $region24: #{net_l2_forward.1} parent=0 // pred_region
    _
  $region25: #{net_l2_forward.1} parent=0 // pred_fallthru
    _
  // Predicated region
  $region26: #{net_l2_forward.1} parent=0 // pred_check
    _
  $region27: #{net_l2_forward.1} parent=0 // pred_check_branch
    %25 = sbr.rel (0) target = $region29
  $region28: #{net_l2_forward.1} parent=0 // pred_region
    _
  $region29: #{net_l2_forward.1} parent=0 // pred_fallthru
    _
  %v26 = vld [vmem:[%s0] sm:$0xff]
  %v27 = vld [vmem:[%s0 + $0x8] sm:$0xff]
  %v28 = vld [vmem:[%s0 + $0x10] sm:$0xff]
  %v29 = vld [vmem:[%s0 + $0x18] sm:$0xff]
  %v30 = vld [vmem:[%s0 + $0x20] sm:$0xff]
  %v31 = vld [vmem:[%s0 + $0x28] sm:$0xff]
  %v32 = vld [vmem:[%s0 + $0x30] sm:$0xff]
  %v33 = vld [vmem:[%s0 + $0x38] sm:$0xff]
  %v34 = vld [vmem:[%s1] sm:$0xff]
  %v35 = vld [vmem:[%s1 + $0x8] sm:$0xff]
  %v36 = vld [vmem:[%s1 + $0x10] sm:$0xff]
  %v37 = vld [vmem:[%s1 + $0x18] sm:$0xff]
  %v38 = vld [vmem:[%s1 + $0x20] sm:$0xff]
  %v39 = vld [vmem:[%s1 + $0x28] sm:$0xff]
  %v40 = vld [vmem:[%s1 + $0x30] sm:$0xff]
  %v41 = vld [vmem:[%s1 + $0x38] sm:$0xff]
  %v42 = vld [vmem:[%s1 + $0x40] sm:$0xff]
  %v43 = vld [vmem:[%s1 + $0x48] sm:$0xff]
  %v44 = vld [vmem:[%s1 + $0x50] sm:$0xff]
  %v45 = vld [vmem:[%s1 + $0x58] sm:$0xff]
  %v46 = vld [vmem:[%s1 + $0x60] sm:$0xff]
  %v47 = vld [vmem:[%s1 + $0x68] sm:$0xff]
  %v48 = vld [vmem:[%s1 + $0x70] sm:$0xff]
  %v49 = vld [vmem:[%s1 + $0x78] sm:$0xff]
  %v50 = vld [vmem:[%s1 + $0x80] sm:$0xff]
  %v51 = vld [vmem:[%s1 + $0x88] sm:$0xff]
  %v52 = vld [vmem:[%s1 + $0x90] sm:$0xff]
  %v53 = vld [vmem:[%s1 + $0x98] sm:$0xff]
  %v54 = vld [vmem:[%s1 + $0xa0] sm:$0xff]
  %v55 = vld [vmem:[%s1 + $0xa8] sm:$0xff]
  %v56 = vld [vmem:[%s1 + $0xb0] sm:$0xff]
  %v57 = vld [vmem:[%s1 + $0xb8] sm:$0xff]
  %v58 = vld [vmem:[%s1 + $0xc0] sm:$0xff]
  %v59 = vld [vmem:[%s1 + $0xc8] sm:$0xff]
  %v60 = vld [vmem:[%s1 + $0xd0] sm:$0xff]
  %v61 = vld [vmem:[%s1 + $0xd8] sm:$0xff]
  %v62 = vld [vmem:[%s1 + $0xe0] sm:$0xff]
  %v63 = vld [vmem:[%s1 + $0xe8] sm:$0xff]
  %v64 = vld [vmem:[%s1 + $0xf0] sm:$0xff]
  %v65 = vld [vmem:[%s1 + $0xf8] sm:$0xff]
  %v66 = vld [vmem:[%s1 + $0x100] sm:$0xff]
  %v67 = vld [vmem:[%s1 + $0x108] sm:$0xff]
  %v68 = vld [vmem:[%s1 + $0x110] sm:$0xff]
  %v69 = vld [vmem:[%s1 + $0x118] sm:$0xff]
  %v70 = vld [vmem:[%s1 + $0x120] sm:$0xff]
  %v71 = vld [vmem:[%s1 + $0x128] sm:$0xff]
  %v72 = vld [vmem:[%s1 + $0x130] sm:$0xff]
  %v73 = vld [vmem:[%s1 + $0x138] sm:$0xff]
  %v74 = vld [vmem:[%s1 + $0x140] sm:$0xff]
  %v75 = vld [vmem:[%s1 + $0x148] sm:$0xff]
  %v76 = vld [vmem:[%s1 + $0x150] sm:$0xff]
  %v77 = vld [vmem:[%s1 + $0x158] sm:$0xff]
  %v78 = vld [vmem:[%s1 + $0x160] sm:$0xff]
  %v79 = vld [vmem:[%s1 + $0x168] sm:$0xff]
  %v80 = vld [vmem:[%s1 + $0x170] sm:$0xff]
  %v81 = vld [vmem:[%s1 + $0x178] sm:$0xff]
  %v82 = vld [vmem:[%s1 + $0x180] sm:$0xff]
  %v83 = vld [vmem:[%s1 + $0x188] sm:$0xff]
  %v84 = vld [vmem:[%s1 + $0x190] sm:$0xff]
  %v85 = vld [vmem:[%s1 + $0x198] sm:$0xff]
  %v86 = vld [vmem:[%s1 + $0x1a0] sm:$0xff]
  %v87 = vld [vmem:[%s1 + $0x1a8] sm:$0xff]
  %v88 = vld [vmem:[%s1 + $0x1b0] sm:$0xff]
  %v89 = vld [vmem:[%s1 + $0x1b8] sm:$0xff]
  %v90 = vld [vmem:[%s1 + $0x1c0] sm:$0xff]
  %v91 = vld [vmem:[%s1 + $0x1c8] sm:$0xff]
  %v92 = vld [vmem:[%s1 + $0x1d0] sm:$0xff]
  %v93 = vld [vmem:[%s1 + $0x1d8] sm:$0xff]
  %v94 = vld [vmem:[%s1 + $0x1e0] sm:$0xff]
  %v95 = vld [vmem:[%s1 + $0x1e8] sm:$0xff]
  %v96 = vld [vmem:[%s1 + $0x1f0] sm:$0xff]
  %v97 = vld [vmem:[%s1 + $0x1f8] sm:$0xff]
  %v98 = vld [vmem:[%s1 + $0x200] sm:$0xff]
  %v99 = vld [vmem:[%s1 + $0x208] sm:$0xff]
  %v100 = vld [vmem:[%s1 + $0x210] sm:$0xff]
  %v101 = vld [vmem:[%s1 + $0x218] sm:$0xff]
  %v102 = vld [vmem:[%s1 + $0x220] sm:$0xff]
  %v103 = vld [vmem:[%s1 + $0x228] sm:$0xff]
  %v104 = vld [vmem:[%s1 + $0x230] sm:$0xff]
  %v105 = vld [vmem:[%s1 + $0x238] sm:$0xff]
  %v106 = vld [vmem:[%s1 + $0x240] sm:$0xff]
  %v107 = vld [vmem:[%s1 + $0x248] sm:$0xff]
  %v108 = vld [vmem:[%s1 + $0x250] sm:$0xff]
  %v109 = vld [vmem:[%s1 + $0x258] sm:$0xff]
  %v110 = vld [vmem:[%s1 + $0x260] sm:$0xff]
  %v111 = vld [vmem:[%s1 + $0x268] sm:$0xff]
  %v112 = vld [vmem:[%s1 + $0x270] sm:$0xff]
  %v113 = vld [vmem:[%s1 + $0x278] sm:$0xff]
  %v114 = vld [vmem:[%s1 + $0x280] sm:$0xff]
  %v115 = vld [vmem:[%s1 + $0x288] sm:$0xff]
  %v116 = vld [vmem:[%s1 + $0x290] sm:$0xff]
  %v117 = vld [vmem:[%s1 + $0x298] sm:$0xff]
  %v118 = vld [vmem:[%s1 + $0x2a0] sm:$0xff]
  %v119 = vld [vmem:[%s1 + $0x2a8] sm:$0xff]
  %v120 = vld [vmem:[%s1 + $0x2b0] sm:$0xff]
  %v121 = vld [vmem:[%s1 + $0x2b8] sm:$0xff]
  %v122 = vld [vmem:[%s1 + $0x2c0] sm:$0xff]
  %v123 = vld [vmem:[%s1 + $0x2c8] sm:$0xff]
  %v124 = vld [vmem:[%s1 + $0x2d0] sm:$0xff]
  %v125 = vld [vmem:[%s1 + $0x2d8] sm:$0xff]
  %v126 = vld [vmem:[%s1 + $0x2e0] sm:$0xff]
  %v127 = vld [vmem:[%s1 + $0x2e8] sm:$0xff]
  %v128 = vld [vmem:[%s1 + $0x2f0] sm:$0xff]
  %v129 = vld [vmem:[%s1 + $0x2f8] sm:$0xff]
  %v130 = vld [vmem:[%s1 + $0x300] sm:$0xff]
  %v131 = vld [vmem:[%s1 + $0x308] sm:$0xff]
  %v132 = vld [vmem:[%s1 + $0x310] sm:$0xff]
  %v133 = vld [vmem:[%s1 + $0x318] sm:$0xff]
  %v134 = vld [vmem:[%s1 + $0x320] sm:$0xff]
  %v135 = vld [vmem:[%s1 + $0x328] sm:$0xff]
  %v136 = vld [vmem:[%s1 + $0x330] sm:$0xff]
  %v137 = vld [vmem:[%s1 + $0x338] sm:$0xff]
  %v138 = vld [vmem:[%s1 + $0x340] sm:$0xff]
  %v139 = vld [vmem:[%s1 + $0x348] sm:$0xff]
  %v140 = vld [vmem:[%s1 + $0x350] sm:$0xff]
  %v141 = vld [vmem:[%s1 + $0x358] sm:$0xff]
  %v142 = vld [vmem:[%s1 + $0x360] sm:$0xff]
  %v143 = vld [vmem:[%s1 + $0x368] sm:$0xff]
  %v144 = vld [vmem:[%s1 + $0x370] sm:$0xff]
  %v145 = vld [vmem:[%s1 + $0x378] sm:$0xff]
  %v146 = vld [vmem:[%s1 + $0x380] sm:$0xff]
  %v147 = vld [vmem:[%s1 + $0x388] sm:$0xff]
  %v148 = vld [vmem:[%s1 + $0x390] sm:$0xff]
  %v149 = vld [vmem:[%s1 + $0x398] sm:$0xff]
  %v150 = vld [vmem:[%s1 + $0x3a0] sm:$0xff]
  %v151 = vld [vmem:[%s1 + $0x3a8] sm:$0xff]
  %v152 = vld [vmem:[%s1 + $0x3b0] sm:$0xff]
  %v153 = vld [vmem:[%s1 + $0x3b8] sm:$0xff]
  %v154 = vld [vmem:[%s1 + $0x3c0] sm:$0xff]
  %v155 = vld [vmem:[%s1 + $0x3c8] sm:$0xff]
  %v156 = vld [vmem:[%s1 + $0x3d0] sm:$0xff]
  %v157 = vld [vmem:[%s1 + $0x3d8] sm:$0xff]
  %v158 = vld [vmem:[%s1 + $0x3e0] sm:$0xff]
  %v159 = vld [vmem:[%s1 + $0x3e8] sm:$0xff]
  %v160 = vld [vmem:[%s1 + $0x3f0] sm:$0xff]
  %v161 = vld [vmem:[%s1 + $0x3f8] sm:$0xff]
  %v162 = vld [vmem:[%s2] sm:$0x3]
  %v164 = vperm.slane %v162, 0
  %v165 = vperm.slane %v162, 1
  %v176 = vunpack.c.l.b16 %v26
  %v177 = vunpack.c.h.b16 %v26
  %v178 = vunpack.c.l.b16 %v27
  %v179 = vunpack.c.h.b16 %v27
  %v180 = vunpack.c.l.b16 %v28
  %v181 = vunpack.c.h.b16 %v28
  %v182 = vunpack.c.l.b16 %v29
  %v183 = vunpack.c.h.b16 %v29
  %v184 = vunpack.c.l.b16 %v30
  %v185 = vunpack.c.h.b16 %v30
  %v186 = vunpack.c.l.b16 %v31
  %v187 = vunpack.c.h.b16 %v31
  %v188 = vunpack.c.l.b16 %v32
  %v189 = vunpack.c.h.b16 %v32
  %v190 = vunpack.c.l.b16 %v33
  %v191 = vunpack.c.h.b16 %v33
  %v192 = vpack.c.b16 %v184, %v176
  %v193 = vpack.c.b16 %v185, %v177
  %v194 = vpack.c.b16 %v186, %v178
  %v195 = vpack.c.b16 %v187, %v179
  %v196 = vpack.c.b16 %v188, %v180
  %v197 = vpack.c.b16 %v189, %v181
  %v198 = vpack.c.b16 %v190, %v182
  %v199 = vpack.c.b16 %v191, %v183
  %v336 = vunpack.c.l.b16 %v34
  %v337 = vunpack.c.h.b16 %v34
  %v338 = vunpack.c.l.b16 %v35
  %v339 = vunpack.c.h.b16 %v35
  %v340 = vunpack.c.l.b16 %v36
  %v341 = vunpack.c.h.b16 %v36
  %v342 = vunpack.c.l.b16 %v37
  %v343 = vunpack.c.h.b16 %v37
  %v344 = vunpack.c.l.b16 %v38
  %v345 = vunpack.c.h.b16 %v38
  %v346 = vunpack.c.l.b16 %v39
  %v347 = vunpack.c.h.b16 %v39
  %v348 = vunpack.c.l.b16 %v40
  %v349 = vunpack.c.h.b16 %v40
  %v350 = vunpack.c.l.b16 %v41
  %v351 = vunpack.c.h.b16 %v41
  %v352 = vunpack.c.l.b16 %v42
  %v353 = vunpack.c.h.b16 %v42
  %v354 = vunpack.c.l.b16 %v43
  %v355 = vunpack.c.h.b16 %v43
  %v356 = vunpack.c.l.b16 %v44
  %v357 = vunpack.c.h.b16 %v44
  %v358 = vunpack.c.l.b16 %v45
  %v359 = vunpack.c.h.b16 %v45
  %v360 = vunpack.c.l.b16 %v46
  %v361 = vunpack.c.h.b16 %v46
  %v362 = vunpack.c.l.b16 %v47
  %v363 = vunpack.c.h.b16 %v47
  %v364 = vunpack.c.l.b16 %v48
  %v365 = vunpack.c.h.b16 %v48
  %v366 = vunpack.c.l.b16 %v49
  %v367 = vunpack.c.h.b16 %v49
  %v368 = vunpack.c.l.b16 %v50
  %v369 = vunpack.c.h.b16 %v50
  %v370 = vunpack.c.l.b16 %v51
  %v371 = vunpack.c.h.b16 %v51
  %v372 = vunpack.c.l.b16 %v52
  %v373 = vunpack.c.h.b16 %v52
  %v374 = vunpack.c.l.b16 %v53
  %v375 = vunpack.c.h.b16 %v53
  %v376 = vunpack.c.l.b16 %v54
  %v377 = vunpack.c.h.b16 %v54
  %v378 = vunpack.c.l.b16 %v55
  %v379 = vunpack.c.h.b16 %v55
  %v380 = vunpack.c.l.b16 %v56
  %v381 = vunpack.c.h.b16 %v56
  %v382 = vunpack.c.l.b16 %v57
  %v383 = vunpack.c.h.b16 %v57
  %v384 = vunpack.c.l.b16 %v58
  %v385 = vunpack.c.h.b16 %v58
  %v386 = vunpack.c.l.b16 %v59
  %v387 = vunpack.c.h.b16 %v59
  %v388 = vunpack.c.l.b16 %v60
  %v389 = vunpack.c.h.b16 %v60
  %v390 = vunpack.c.l.b16 %v61
  %v391 = vunpack.c.h.b16 %v61
  %v392 = vunpack.c.l.b16 %v62
  %v393 = vunpack.c.h.b16 %v62
  %v394 = vunpack.c.l.b16 %v63
  %v395 = vunpack.c.h.b16 %v63
  %v396 = vunpack.c.l.b16 %v64
  %v397 = vunpack.c.h.b16 %v64
  %v398 = vunpack.c.l.b16 %v65
  %v399 = vunpack.c.h.b16 %v65
  %v400 = vunpack.c.l.b16 %v66
  %v401 = vunpack.c.h.b16 %v66
  %v402 = vunpack.c.l.b16 %v67
  %v403 = vunpack.c.h.b16 %v67
  %v404 = vunpack.c.l.b16 %v68
  %v405 = vunpack.c.h.b16 %v68
  %v406 = vunpack.c.l.b16 %v69
  %v407 = vunpack.c.h.b16 %v69
  %v408 = vunpack.c.l.b16 %v70
  %v409 = vunpack.c.h.b16 %v70
  %v410 = vunpack.c.l.b16 %v71
  %v411 = vunpack.c.h.b16 %v71
  %v412 = vunpack.c.l.b16 %v72
  %v413 = vunpack.c.h.b16 %v72
  %v414 = vunpack.c.l.b16 %v73
  %v415 = vunpack.c.h.b16 %v73
  %v416 = vunpack.c.l.b16 %v74
  %v417 = vunpack.c.h.b16 %v74
  %v418 = vunpack.c.l.b16 %v75
  %v419 = vunpack.c.h.b16 %v75
  %v420 = vunpack.c.l.b16 %v76
  %v421 = vunpack.c.h.b16 %v76
  %v422 = vunpack.c.l.b16 %v77
  %v423 = vunpack.c.h.b16 %v77
  %v424 = vunpack.c.l.b16 %v78
  %v425 = vunpack.c.h.b16 %v78
  %v426 = vunpack.c.l.b16 %v79
  %v427 = vunpack.c.h.b16 %v79
  %v428 = vunpack.c.l.b16 %v80
  %v429 = vunpack.c.h.b16 %v80
  %v430 = vunpack.c.l.b16 %v81
  %v431 = vunpack.c.h.b16 %v81
  %v432 = vunpack.c.l.b16 %v82
  %v433 = vunpack.c.h.b16 %v82
  %v434 = vunpack.c.l.b16 %v83
  %v435 = vunpack.c.h.b16 %v83
  %v436 = vunpack.c.l.b16 %v84
  %v437 = vunpack.c.h.b16 %v84
  %v438 = vunpack.c.l.b16 %v85
  %v439 = vunpack.c.h.b16 %v85
  %v440 = vunpack.c.l.b16 %v86
  %v441 = vunpack.c.h.b16 %v86
  %v442 = vunpack.c.l.b16 %v87
  %v443 = vunpack.c.h.b16 %v87
  %v444 = vunpack.c.l.b16 %v88
  %v445 = vunpack.c.h.b16 %v88
  %v446 = vunpack.c.l.b16 %v89
  %v447 = vunpack.c.h.b16 %v89
  %v448 = vunpack.c.l.b16 %v90
  %v449 = vunpack.c.h.b16 %v90
  %v450 = vunpack.c.l.b16 %v91
  %v451 = vunpack.c.h.b16 %v91
  %v452 = vunpack.c.l.b16 %v92
  %v453 = vunpack.c.h.b16 %v92
  %v454 = vunpack.c.l.b16 %v93
  %v455 = vunpack.c.h.b16 %v93
  %v456 = vunpack.c.l.b16 %v94
  %v457 = vunpack.c.h.b16 %v94
  %v458 = vunpack.c.l.b16 %v95
  %v459 = vunpack.c.h.b16 %v95
  %v460 = vunpack.c.l.b16 %v96
  %v461 = vunpack.c.h.b16 %v96
  %v462 = vunpack.c.l.b16 %v97
  %v463 = vunpack.c.h.b16 %v97
  %v464 = vunpack.c.l.b16 %v98
  %v465 = vunpack.c.h.b16 %v98
  %v466 = vunpack.c.l.b16 %v99
  %v467 = vunpack.c.h.b16 %v99
  %v468 = vunpack.c.l.b16 %v100
  %v469 = vunpack.c.h.b16 %v100
  %v470 = vunpack.c.l.b16 %v101
  %v471 = vunpack.c.h.b16 %v101
  %v472 = vunpack.c.l.b16 %v102
  %v473 = vunpack.c.h.b16 %v102
  %v474 = vunpack.c.l.b16 %v103
  %v475 = vunpack.c.h.b16 %v103
  %v476 = vunpack.c.l.b16 %v104
  %v477 = vunpack.c.h.b16 %v104
  %v478 = vunpack.c.l.b16 %v105
  %v479 = vunpack.c.h.b16 %v105
  %v480 = vunpack.c.l.b16 %v106
  %v481 = vunpack.c.h.b16 %v106
  %v482 = vunpack.c.l.b16 %v107
  %v483 = vunpack.c.h.b16 %v107
  %v484 = vunpack.c.l.b16 %v108
  %v485 = vunpack.c.h.b16 %v108
  %v486 = vunpack.c.l.b16 %v109
  %v487 = vunpack.c.h.b16 %v109
  %v488 = vunpack.c.l.b16 %v110
  %v489 = vunpack.c.h.b16 %v110
  %v490 = vunpack.c.l.b16 %v111
  %v491 = vunpack.c.h.b16 %v111
  %v492 = vunpack.c.l.b16 %v112
  %v493 = vunpack.c.h.b16 %v112
  %v494 = vunpack.c.l.b16 %v113
  %v495 = vunpack.c.h.b16 %v113
  %v496 = vunpack.c.l.b16 %v114
  %v497 = vunpack.c.h.b16 %v114
  %v498 = vunpack.c.l.b16 %v115
  %v499 = vunpack.c.h.b16 %v115
  %v500 = vunpack.c.l.b16 %v116
  %v501 = vunpack.c.h.b16 %v116
  %v502 = vunpack.c.l.b16 %v117
  %v503 = vunpack.c.h.b16 %v117
  %v504 = vunpack.c.l.b16 %v118
  %v505 = vunpack.c.h.b16 %v118
  %v506 = vunpack.c.l.b16 %v119
  %v507 = vunpack.c.h.b16 %v119
  %v508 = vunpack.c.l.b16 %v120
  %v509 = vunpack.c.h.b16 %v120
  %v510 = vunpack.c.l.b16 %v121
  %v511 = vunpack.c.h.b16 %v121
  %v512 = vunpack.c.l.b16 %v122
  %v513 = vunpack.c.h.b16 %v122
  %v514 = vunpack.c.l.b16 %v123
  %v515 = vunpack.c.h.b16 %v123
  %v516 = vunpack.c.l.b16 %v124
  %v517 = vunpack.c.h.b16 %v124
  %v518 = vunpack.c.l.b16 %v125
  %v519 = vunpack.c.h.b16 %v125
  %v520 = vunpack.c.l.b16 %v126
  %v521 = vunpack.c.h.b16 %v126
  %v522 = vunpack.c.l.b16 %v127
  %v523 = vunpack.c.h.b16 %v127
  %v524 = vunpack.c.l.b16 %v128
  %v525 = vunpack.c.h.b16 %v128
  %v526 = vunpack.c.l.b16 %v129
  %v527 = vunpack.c.h.b16 %v129
  %v528 = vunpack.c.l.b16 %v130
  %v529 = vunpack.c.h.b16 %v130
  %v530 = vunpack.c.l.b16 %v131
  %v531 = vunpack.c.h.b16 %v131
  %v532 = vunpack.c.l.b16 %v132
  %v533 = vunpack.c.h.b16 %v132
  %v534 = vunpack.c.l.b16 %v133
  %v535 = vunpack.c.h.b16 %v133
  %v536 = vunpack.c.l.b16 %v134
  %v537 = vunpack.c.h.b16 %v134
  %v538 = vunpack.c.l.b16 %v135
  %v539 = vunpack.c.h.b16 %v135
  %v540 = vunpack.c.l.b16 %v136
  %v541 = vunpack.c.h.b16 %v136
  %v542 = vunpack.c.l.b16 %v137
  %v543 = vunpack.c.h.b16 %v137
  %v544 = vunpack.c.l.b16 %v138
  %v545 = vunpack.c.h.b16 %v138
  %v546 = vunpack.c.l.b16 %v139
  %v547 = vunpack.c.h.b16 %v139
  %v548 = vunpack.c.l.b16 %v140
  %v549 = vunpack.c.h.b16 %v140
  %v550 = vunpack.c.l.b16 %v141
  %v551 = vunpack.c.h.b16 %v141
  %v552 = vunpack.c.l.b16 %v142
  %v553 = vunpack.c.h.b16 %v142
  %v554 = vunpack.c.l.b16 %v143
  %v555 = vunpack.c.h.b16 %v143
  %v556 = vunpack.c.l.b16 %v144
  %v557 = vunpack.c.h.b16 %v144
  %v558 = vunpack.c.l.b16 %v145
  %v559 = vunpack.c.h.b16 %v145
  %v560 = vunpack.c.l.b16 %v146
  %v561 = vunpack.c.h.b16 %v146
  %v562 = vunpack.c.l.b16 %v147
  %v563 = vunpack.c.h.b16 %v147
  %v564 = vunpack.c.l.b16 %v148
  %v565 = vunpack.c.h.b16 %v148
  %v566 = vunpack.c.l.b16 %v149
  %v567 = vunpack.c.h.b16 %v149
  %v568 = vunpack.c.l.b16 %v150
  %v569 = vunpack.c.h.b16 %v150
  %v570 = vunpack.c.l.b16 %v151
  %v571 = vunpack.c.h.b16 %v151
  %v572 = vunpack.c.l.b16 %v152
  %v573 = vunpack.c.h.b16 %v152
  %v574 = vunpack.c.l.b16 %v153
  %v575 = vunpack.c.h.b16 %v153
  %v576 = vunpack.c.l.b16 %v154
  %v577 = vunpack.c.h.b16 %v154
  %v578 = vunpack.c.l.b16 %v155
  %v579 = vunpack.c.h.b16 %v155
  %v580 = vunpack.c.l.b16 %v156
  %v581 = vunpack.c.h.b16 %v156
  %v582 = vunpack.c.l.b16 %v157
  %v583 = vunpack.c.h.b16 %v157
  %v584 = vunpack.c.l.b16 %v158
  %v585 = vunpack.c.h.b16 %v158
  %v586 = vunpack.c.l.b16 %v159
  %v587 = vunpack.c.h.b16 %v159
  %v588 = vunpack.c.l.b16 %v160
  %v589 = vunpack.c.h.b16 %v160
  %v590 = vunpack.c.l.b16 %v161
  %v591 = vunpack.c.h.b16 %v161
  %v592 = vpack.c.b16 %v338, %v336
  %v593 = vpack.c.b16 %v339, %v337
  %v594 = vpack.c.b16 %v342, %v340
  %v595 = vpack.c.b16 %v343, %v341
  %v596 = vpack.c.b16 %v346, %v344
  %v597 = vpack.c.b16 %v347, %v345
  %v598 = vpack.c.b16 %v350, %v348
  %v599 = vpack.c.b16 %v351, %v349
  %v600 = vpack.c.b16 %v354, %v352
  %v601 = vpack.c.b16 %v355, %v353
  %v602 = vpack.c.b16 %v358, %v356
  %v603 = vpack.c.b16 %v359, %v357
  %v604 = vpack.c.b16 %v362, %v360
  %v605 = vpack.c.b16 %v363, %v361
  %v606 = vpack.c.b16 %v366, %v364
  %v607 = vpack.c.b16 %v367, %v365
  %v608 = vpack.c.b16 %v370, %v368
  %v609 = vpack.c.b16 %v371, %v369
  %v610 = vpack.c.b16 %v374, %v372
  %v611 = vpack.c.b16 %v375, %v373
  %v612 = vpack.c.b16 %v378, %v376
  %v613 = vpack.c.b16 %v379, %v377
  %v614 = vpack.c.b16 %v382, %v380
  %v615 = vpack.c.b16 %v383, %v381
  %v616 = vpack.c.b16 %v386, %v384
  %v617 = vpack.c.b16 %v387, %v385
  %v618 = vpack.c.b16 %v390, %v388
  %v619 = vpack.c.b16 %v391, %v389
  %v620 = vpack.c.b16 %v394, %v392
  %v621 = vpack.c.b16 %v395, %v393
  %v622 = vpack.c.b16 %v398, %v396
  %v623 = vpack.c.b16 %v399, %v397
  %v624 = vpack.c.b16 %v402, %v400
  %v625 = vpack.c.b16 %v403, %v401
  %v626 = vpack.c.b16 %v406, %v404
  %v627 = vpack.c.b16 %v407, %v405
  %v628 = vpack.c.b16 %v410, %v408
  %v629 = vpack.c.b16 %v411, %v409
  %v630 = vpack.c.b16 %v414, %v412
  %v631 = vpack.c.b16 %v415, %v413
  %v632 = vpack.c.b16 %v418, %v416
  %v633 = vpack.c.b16 %v419, %v417
  %v634 = vpack.c.b16 %v422, %v420
  %v635 = vpack.c.b16 %v423, %v421
  %v636 = vpack.c.b16 %v426, %v424
  %v637 = vpack.c.b16 %v427, %v425
  %v638 = vpack.c.b16 %v430, %v428
  %v639 = vpack.c.b16 %v431, %v429
  %v640 = vpack.c.b16 %v434, %v432
  %v641 = vpack.c.b16 %v435, %v433
  %v642 = vpack.c.b16 %v438, %v436
  %v643 = vpack.c.b16 %v439, %v437
  %v644 = vpack.c.b16 %v442, %v440
  %v645 = vpack.c.b16 %v443, %v441
  %v646 = vpack.c.b16 %v446, %v444
  %v647 = vpack.c.b16 %v447, %v445
  %v648 = vpack.c.b16 %v450, %v448
  %v649 = vpack.c.b16 %v451, %v449
  %v650 = vpack.c.b16 %v454, %v452
  %v651 = vpack.c.b16 %v455, %v453
  %v652 = vpack.c.b16 %v458, %v456
  %v653 = vpack.c.b16 %v459, %v457
  %v654 = vpack.c.b16 %v462, %v460
  %v655 = vpack.c.b16 %v463, %v461
  %v656 = vpack.c.b16 %v466, %v464
  %v657 = vpack.c.b16 %v467, %v465
  %v658 = vpack.c.b16 %v470, %v468
  %v659 = vpack.c.b16 %v471, %v469
  %v660 = vpack.c.b16 %v474, %v472
  %v661 = vpack.c.b16 %v475, %v473
  %v662 = vpack.c.b16 %v478, %v476
  %v663 = vpack.c.b16 %v479, %v477
  %v664 = vpack.c.b16 %v482, %v480
  %v665 = vpack.c.b16 %v483, %v481
  %v666 = vpack.c.b16 %v486, %v484
  %v667 = vpack.c.b16 %v487, %v485
  %v668 = vpack.c.b16 %v490, %v488
  %v669 = vpack.c.b16 %v491, %v489
  %v670 = vpack.c.b16 %v494, %v492
  %v671 = vpack.c.b16 %v495, %v493
  %v672 = vpack.c.b16 %v498, %v496
  %v673 = vpack.c.b16 %v499, %v497
  %v674 = vpack.c.b16 %v502, %v500
  %v675 = vpack.c.b16 %v503, %v501
  %v676 = vpack.c.b16 %v506, %v504
  %v677 = vpack.c.b16 %v507, %v505
  %v678 = vpack.c.b16 %v510, %v508
  %v679 = vpack.c.b16 %v511, %v509
  %v680 = vpack.c.b16 %v514, %v512
  %v681 = vpack.c.b16 %v515, %v513
  %v682 = vpack.c.b16 %v518, %v516
  %v683 = vpack.c.b16 %v519, %v517
  %v684 = vpack.c.b16 %v522, %v520
  %v685 = vpack.c.b16 %v523, %v521
  %v686 = vpack.c.b16 %v526, %v524
  %v687 = vpack.c.b16 %v527, %v525
  %v688 = vpack.c.b16 %v530, %v528
  %v689 = vpack.c.b16 %v531, %v529
  %v690 = vpack.c.b16 %v534, %v532
  %v691 = vpack.c.b16 %v535, %v533
  %v692 = vpack.c.b16 %v538, %v536
  %v693 = vpack.c.b16 %v539, %v537
  %v694 = vpack.c.b16 %v542, %v540
  %v695 = vpack.c.b16 %v543, %v541
  %v696 = vpack.c.b16 %v546, %v544
  %v697 = vpack.c.b16 %v547, %v545
  %v698 = vpack.c.b16 %v550, %v548
  %v699 = vpack.c.b16 %v551, %v549
  %v700 = vpack.c.b16 %v554, %v552
  %v701 = vpack.c.b16 %v555, %v553
  %v702 = vpack.c.b16 %v558, %v556
  %v703 = vpack.c.b16 %v559, %v557
  %v704 = vpack.c.b16 %v562, %v560
  %v705 = vpack.c.b16 %v563, %v561
  %v706 = vpack.c.b16 %v566, %v564
  %v707 = vpack.c.b16 %v567, %v565
  %v708 = vpack.c.b16 %v570, %v568
  %v709 = vpack.c.b16 %v571, %v569
  %v710 = vpack.c.b16 %v574, %v572
  %v711 = vpack.c.b16 %v575, %v573
  %v712 = vpack.c.b16 %v578, %v576
  %v713 = vpack.c.b16 %v579, %v577
  %v714 = vpack.c.b16 %v582, %v580
  %v715 = vpack.c.b16 %v583, %v581
  %v716 = vpack.c.b16 %v586, %v584
  %v717 = vpack.c.b16 %v587, %v585
  %v718 = vpack.c.b16 %v590, %v588
  %v719 = vpack.c.b16 %v591, %v589
  %848 = vmatpush.bf16.msra.mxu0 %v606
  %849 = vmatpush.bf16.msra.mxu0 %v604
  %850 = vmatpush.bf16.msra.mxu0 %v602
  %851 = vmatpush.bf16.msra.mxu0 %v600
  %852 = vmatpush.bf16.msra.mxu0 %v598
  %853 = vmatpush.bf16.msra.mxu0 %v596
  %854 = vmatpush.bf16.msra.mxu0 %v594
  %855 = vmatpush.bf16.msra.mxu0 %v592
  %856 = vmatmul.bf16.gmra.mxu0 %v192
  %v857 = vpop.f32.mrf.mxu0
  %v858 = vadd.f32 %v164, %v857
  %v859 = vpop.f32.mrf.mxu0
  %v860 = vadd.f32 %v164, %v859
  %861 = vdwg.mxu0
  %862 = vmatpush.bf16.msra.mxu0 %v622
  %863 = vmatpush.bf16.msra.mxu0 %v620
  %864 = vmatpush.bf16.msra.mxu0 %v618
  %865 = vmatpush.bf16.msra.mxu0 %v616
  %866 = vmatpush.bf16.msra.mxu0 %v614
  %867 = vmatpush.bf16.msra.mxu0 %v612
  %868 = vmatpush.bf16.msra.mxu0 %v610
  %869 = vmatpush.bf16.msra.mxu0 %v608
  %870 = vmatmul.bf16.gmra.mxu0 %v193
  %v871 = vpop.f32.mrf.mxu0
  %v872 = vadd.f32 %v858, %v871
  %v873 = vpop.f32.mrf.mxu0
  %v874 = vadd.f32 %v860, %v873
  %875 = vdwg.mxu0
  %876 = vmatpush.bf16.msra.mxu0 %v638
  %877 = vmatpush.bf16.msra.mxu0 %v636
  %878 = vmatpush.bf16.msra.mxu0 %v634
  %879 = vmatpush.bf16.msra.mxu0 %v632
  %880 = vmatpush.bf16.msra.mxu0 %v630
  %881 = vmatpush.bf16.msra.mxu0 %v628
  %882 = vmatpush.bf16.msra.mxu0 %v626
  %883 = vmatpush.bf16.msra.mxu0 %v624
  %884 = vmatmul.bf16.gmra.mxu0 %v194
  %v885 = vpop.f32.mrf.mxu0
  %v886 = vadd.f32 %v872, %v885
  %v887 = vpop.f32.mrf.mxu0
  %v888 = vadd.f32 %v874, %v887
  %889 = vdwg.mxu0
  %890 = vmatpush.bf16.msra.mxu0 %v654
  %891 = vmatpush.bf16.msra.mxu0 %v652
  %892 = vmatpush.bf16.msra.mxu0 %v650
  %893 = vmatpush.bf16.msra.mxu0 %v648
  %894 = vmatpush.bf16.msra.mxu0 %v646
  %895 = vmatpush.bf16.msra.mxu0 %v644
  %896 = vmatpush.bf16.msra.mxu0 %v642
  %897 = vmatpush.bf16.msra.mxu0 %v640
  %898 = vmatmul.bf16.gmra.mxu0 %v195
  %v899 = vpop.f32.mrf.mxu0
  %v900 = vadd.f32 %v886, %v899
  %v901 = vpop.f32.mrf.mxu0
  %v902 = vadd.f32 %v888, %v901
  %903 = vdwg.mxu0
  %904 = vmatpush.bf16.msra.mxu0 %v670
  %905 = vmatpush.bf16.msra.mxu0 %v668
  %906 = vmatpush.bf16.msra.mxu0 %v666
  %907 = vmatpush.bf16.msra.mxu0 %v664
  %908 = vmatpush.bf16.msra.mxu0 %v662
  %909 = vmatpush.bf16.msra.mxu0 %v660
  %910 = vmatpush.bf16.msra.mxu0 %v658
  %911 = vmatpush.bf16.msra.mxu0 %v656
  %912 = vmatmul.bf16.gmra.mxu0 %v196
  %v913 = vpop.f32.mrf.mxu0
  %v914 = vadd.f32 %v900, %v913
  %v915 = vpop.f32.mrf.mxu0
  %v916 = vadd.f32 %v902, %v915
  %917 = vdwg.mxu0
  %918 = vmatpush.bf16.msra.mxu0 %v686
  %919 = vmatpush.bf16.msra.mxu0 %v684
  %920 = vmatpush.bf16.msra.mxu0 %v682
  %921 = vmatpush.bf16.msra.mxu0 %v680
  %922 = vmatpush.bf16.msra.mxu0 %v678
  %923 = vmatpush.bf16.msra.mxu0 %v676
  %924 = vmatpush.bf16.msra.mxu0 %v674
  %925 = vmatpush.bf16.msra.mxu0 %v672
  %926 = vmatmul.bf16.gmra.mxu0 %v197
  %v927 = vpop.f32.mrf.mxu0
  %v928 = vadd.f32 %v914, %v927
  %v929 = vpop.f32.mrf.mxu0
  %v930 = vadd.f32 %v916, %v929
  %931 = vdwg.mxu0
  %932 = vmatpush.bf16.msra.mxu0 %v702
  %933 = vmatpush.bf16.msra.mxu0 %v700
  %934 = vmatpush.bf16.msra.mxu0 %v698
  %935 = vmatpush.bf16.msra.mxu0 %v696
  %936 = vmatpush.bf16.msra.mxu0 %v694
  %937 = vmatpush.bf16.msra.mxu0 %v692
  %938 = vmatpush.bf16.msra.mxu0 %v690
  %939 = vmatpush.bf16.msra.mxu0 %v688
  %940 = vmatmul.bf16.gmra.mxu0 %v198
  %v941 = vpop.f32.mrf.mxu0
  %v942 = vadd.f32 %v928, %v941
  %v943 = vpop.f32.mrf.mxu0
  %v944 = vadd.f32 %v930, %v943
  %945 = vdwg.mxu0
  %946 = vmatpush.bf16.msra.mxu0 %v718
  %947 = vmatpush.bf16.msra.mxu0 %v716
  %948 = vmatpush.bf16.msra.mxu0 %v714
  %949 = vmatpush.bf16.msra.mxu0 %v712
  %950 = vmatpush.bf16.msra.mxu0 %v710
  %951 = vmatpush.bf16.msra.mxu0 %v708
  %952 = vmatpush.bf16.msra.mxu0 %v706
  %953 = vmatpush.bf16.msra.mxu0 %v704
  %954 = vmatmul.bf16.gmra.mxu0 %v199
  %v955 = vpop.f32.mrf.mxu0
  %v956 = vadd.f32 %v942, %v955
  %v957 = vpop.f32.mrf.mxu0
  %v958 = vadd.f32 %v944, %v957
  %959 = vdwg.mxu0
  %960 = vmatpush.bf16.msra.mxu0 %v607
  %961 = vmatpush.bf16.msra.mxu0 %v605
  %962 = vmatpush.bf16.msra.mxu0 %v603
  %963 = vmatpush.bf16.msra.mxu0 %v601
  %964 = vmatpush.bf16.msra.mxu0 %v599
  %965 = vmatpush.bf16.msra.mxu0 %v597
  %966 = vmatpush.bf16.msra.mxu0 %v595
  %967 = vmatpush.bf16.msra.mxu0 %v593
  %968 = vmatmul.bf16.gmra.mxu0 %v192
  %v969 = vpop.f32.mrf.mxu0
  %v970 = vadd.f32 %v165, %v969
  %v971 = vpop.f32.mrf.mxu0
  %v972 = vadd.f32 %v165, %v971
  %973 = vdwg.mxu0
  %974 = vmatpush.bf16.msra.mxu0 %v623
  %975 = vmatpush.bf16.msra.mxu0 %v621
  %976 = vmatpush.bf16.msra.mxu0 %v619
  %977 = vmatpush.bf16.msra.mxu0 %v617
  %978 = vmatpush.bf16.msra.mxu0 %v615
  %979 = vmatpush.bf16.msra.mxu0 %v613
  %980 = vmatpush.bf16.msra.mxu0 %v611
  %981 = vmatpush.bf16.msra.mxu0 %v609
  %982 = vmatmul.bf16.gmra.mxu0 %v193
  %v983 = vpop.f32.mrf.mxu0
  %v984 = vadd.f32 %v970, %v983
  %v985 = vpop.f32.mrf.mxu0
  %v986 = vadd.f32 %v972, %v985
  %987 = vdwg.mxu0
  %988 = vmatpush.bf16.msra.mxu0 %v639
  %989 = vmatpush.bf16.msra.mxu0 %v637
  %990 = vmatpush.bf16.msra.mxu0 %v635
  %991 = vmatpush.bf16.msra.mxu0 %v633
  %992 = vmatpush.bf16.msra.mxu0 %v631
  %993 = vmatpush.bf16.msra.mxu0 %v629
  %994 = vmatpush.bf16.msra.mxu0 %v627
  %995 = vmatpush.bf16.msra.mxu0 %v625
  %996 = vmatmul.bf16.gmra.mxu0 %v194
  %v997 = vpop.f32.mrf.mxu0
  %v998 = vadd.f32 %v984, %v997
  %v999 = vpop.f32.mrf.mxu0
  %v1000 = vadd.f32 %v986, %v999
  %1001 = vdwg.mxu0
  %1002 = vmatpush.bf16.msra.mxu0 %v655
  %1003 = vmatpush.bf16.msra.mxu0 %v653
  %1004 = vmatpush.bf16.msra.mxu0 %v651
  %1005 = vmatpush.bf16.msra.mxu0 %v649
  %1006 = vmatpush.bf16.msra.mxu0 %v647
  %1007 = vmatpush.bf16.msra.mxu0 %v645
  %1008 = vmatpush.bf16.msra.mxu0 %v643
  %1009 = vmatpush.bf16.msra.mxu0 %v641
  %1010 = vmatmul.bf16.gmra.mxu0 %v195
  %v1011 = vpop.f32.mrf.mxu0
  %v1012 = vadd.f32 %v998, %v1011
  %v1013 = vpop.f32.mrf.mxu0
  %v1014 = vadd.f32 %v1000, %v1013
  %1015 = vdwg.mxu0
  %1016 = vmatpush.bf16.msra.mxu0 %v671
  %1017 = vmatpush.bf16.msra.mxu0 %v669
  %1018 = vmatpush.bf16.msra.mxu0 %v667
  %1019 = vmatpush.bf16.msra.mxu0 %v665
  %1020 = vmatpush.bf16.msra.mxu0 %v663
  %1021 = vmatpush.bf16.msra.mxu0 %v661
  %1022 = vmatpush.bf16.msra.mxu0 %v659
  %1023 = vmatpush.bf16.msra.mxu0 %v657
  %1024 = vmatmul.bf16.gmra.mxu0 %v196
  %v1025 = vpop.f32.mrf.mxu0
  %v1026 = vadd.f32 %v1012, %v1025
  %v1027 = vpop.f32.mrf.mxu0
  %v1028 = vadd.f32 %v1014, %v1027
  %1029 = vdwg.mxu0
  %1030 = vmatpush.bf16.msra.mxu0 %v687
  %1031 = vmatpush.bf16.msra.mxu0 %v685
  %1032 = vmatpush.bf16.msra.mxu0 %v683
  %1033 = vmatpush.bf16.msra.mxu0 %v681
  %1034 = vmatpush.bf16.msra.mxu0 %v679
  %1035 = vmatpush.bf16.msra.mxu0 %v677
  %1036 = vmatpush.bf16.msra.mxu0 %v675
  %1037 = vmatpush.bf16.msra.mxu0 %v673
  %1038 = vmatmul.bf16.gmra.mxu0 %v197
  %v1039 = vpop.f32.mrf.mxu0
  %v1040 = vadd.f32 %v1026, %v1039
  %v1041 = vpop.f32.mrf.mxu0
  %v1042 = vadd.f32 %v1028, %v1041
  %1043 = vdwg.mxu0
  %1044 = vmatpush.bf16.msra.mxu0 %v703
  %1045 = vmatpush.bf16.msra.mxu0 %v701
  %1046 = vmatpush.bf16.msra.mxu0 %v699
  %1047 = vmatpush.bf16.msra.mxu0 %v697
  %1048 = vmatpush.bf16.msra.mxu0 %v695
  %1049 = vmatpush.bf16.msra.mxu0 %v693
  %1050 = vmatpush.bf16.msra.mxu0 %v691
  %1051 = vmatpush.bf16.msra.mxu0 %v689
  %1052 = vmatmul.bf16.gmra.mxu0 %v198
  %v1053 = vpop.f32.mrf.mxu0
  %v1054 = vadd.f32 %v1040, %v1053
  %v1055 = vpop.f32.mrf.mxu0
  %v1056 = vadd.f32 %v1042, %v1055
  %1057 = vdwg.mxu0
  %1058 = vmatpush.bf16.msra.mxu0 %v719
  %1059 = vmatpush.bf16.msra.mxu0 %v717
  %1060 = vmatpush.bf16.msra.mxu0 %v715
  %1061 = vmatpush.bf16.msra.mxu0 %v713
  %1062 = vmatpush.bf16.msra.mxu0 %v711
  %1063 = vmatpush.bf16.msra.mxu0 %v709
  %1064 = vmatpush.bf16.msra.mxu0 %v707
  %1065 = vmatpush.bf16.msra.mxu0 %v705
  %1066 = vmatmul.bf16.gmra.mxu0 %v199
  %v1067 = vpop.f32.mrf.mxu0
  %v1068 = vadd.f32 %v1054, %v1067
  %v1069 = vpop.f32.mrf.mxu0
  %v1070 = vadd.f32 %v1056, %v1069
  %1071 = vdwg.mxu0
  %v1072 = vmax.f32 %v956, 0.0
  %v1073 = vmax.f32 %v1068, 0.0
  %v1074 = vmax.f32 %v958, 0.0
  %v1075 = vmax.f32 %v1070, 0.0
  %v1076 = vpack.c.bf16 %v1074, %v1072
  %v1077 = vpack.c.bf16 %v1075, %v1073
  %v1078 = vld [vmem:[%s3] sm:$0xf]
  %v1079 = vld [vmem:[%s3 + $0x4] sm:$0xf]
  %v1080 = vld [vmem:[%s3 + $0x8] sm:$0xf]
  %v1081 = vld [vmem:[%s3 + $0xc] sm:$0xf]
  %v1082 = vld [vmem:[%s3 + $0x10] sm:$0xf]
  %v1083 = vld [vmem:[%s3 + $0x14] sm:$0xf]
  %v1084 = vld [vmem:[%s3 + $0x18] sm:$0xf]
  %v1085 = vld [vmem:[%s3 + $0x1c] sm:$0xf]
  %v1086 = vld [vmem:[%s3 + $0x20] sm:$0xf]
  %v1087 = vld [vmem:[%s3 + $0x24] sm:$0xf]
  %v1088 = vld [vmem:[%s3 + $0x28] sm:$0xf]
  %v1089 = vld [vmem:[%s3 + $0x2c] sm:$0xf]
  %v1090 = vld [vmem:[%s3 + $0x30] sm:$0xf]
  %v1091 = vld [vmem:[%s3 + $0x34] sm:$0xf]
  %v1092 = vld [vmem:[%s3 + $0x38] sm:$0xf]
  %v1093 = vld [vmem:[%s3 + $0x3c] sm:$0xf]
  %v1094 = vld [vmem:[%s3 + $0x40] sm:$0xf]
  %v1095 = vld [vmem:[%s3 + $0x44] sm:$0xf]
  %v1096 = vld [vmem:[%s3 + $0x48] sm:$0xf]
  %v1097 = vld [vmem:[%s3 + $0x4c] sm:$0xf]
  %v1098 = vld [vmem:[%s3 + $0x50] sm:$0xf]
  %v1099 = vld [vmem:[%s3 + $0x54] sm:$0xf]
  %v1100 = vld [vmem:[%s3 + $0x58] sm:$0xf]
  %v1101 = vld [vmem:[%s3 + $0x5c] sm:$0xf]
  %v1102 = vld [vmem:[%s3 + $0x60] sm:$0xf]
  %v1103 = vld [vmem:[%s3 + $0x64] sm:$0xf]
  %v1104 = vld [vmem:[%s3 + $0x68] sm:$0xf]
  %v1105 = vld [vmem:[%s3 + $0x6c] sm:$0xf]
  %v1106 = vld [vmem:[%s3 + $0x70] sm:$0xf]
  %v1107 = vld [vmem:[%s3 + $0x74] sm:$0xf]
  %v1108 = vld [vmem:[%s3 + $0x78] sm:$0xf]
  %v1109 = vld [vmem:[%s3 + $0x7c] sm:$0xf]
  %v1110 = vld [vmem:[%s4] sm:$0x1]
  %v1112 = vperm.slane %v1110, 0
  %v1146 = vunpack.c.l.b16 %v1078
  %v1147 = vunpack.c.l.b16 %v1079
  %v1148 = vunpack.c.l.b16 %v1080
  %v1149 = vunpack.c.l.b16 %v1081
  %v1150 = vunpack.c.l.b16 %v1082
  %v1151 = vunpack.c.l.b16 %v1083
  %v1152 = vunpack.c.l.b16 %v1084
  %v1153 = vunpack.c.l.b16 %v1085
  %v1154 = vunpack.c.l.b16 %v1086
  %v1155 = vunpack.c.l.b16 %v1087
  %v1156 = vunpack.c.l.b16 %v1088
  %v1157 = vunpack.c.l.b16 %v1089
  %v1158 = vunpack.c.l.b16 %v1090
  %v1159 = vunpack.c.l.b16 %v1091
  %v1160 = vunpack.c.l.b16 %v1092
  %v1161 = vunpack.c.l.b16 %v1093
  %v1162 = vunpack.c.l.b16 %v1094
  %v1163 = vunpack.c.l.b16 %v1095
  %v1164 = vunpack.c.l.b16 %v1096
  %v1165 = vunpack.c.l.b16 %v1097
  %v1166 = vunpack.c.l.b16 %v1098
  %v1167 = vunpack.c.l.b16 %v1099
  %v1168 = vunpack.c.l.b16 %v1100
  %v1169 = vunpack.c.l.b16 %v1101
  %v1170 = vunpack.c.l.b16 %v1102
  %v1171 = vunpack.c.l.b16 %v1103
  %v1172 = vunpack.c.l.b16 %v1104
  %v1173 = vunpack.c.l.b16 %v1105
  %v1174 = vunpack.c.l.b16 %v1106
  %v1175 = vunpack.c.l.b16 %v1107
  %v1176 = vunpack.c.l.b16 %v1108
  %v1177 = vunpack.c.l.b16 %v1109
  %v1178 = vpack.c.b16 %v1147, %v1146
  %v1179 = vpack.c.b16 %v1149, %v1148
  %v1180 = vpack.c.b16 %v1151, %v1150
  %v1181 = vpack.c.b16 %v1153, %v1152
  %v1182 = vpack.c.b16 %v1155, %v1154
  %v1183 = vpack.c.b16 %v1157, %v1156
  %v1184 = vpack.c.b16 %v1159, %v1158
  %v1185 = vpack.c.b16 %v1161, %v1160
  %v1186 = vpack.c.b16 %v1163, %v1162
  %v1187 = vpack.c.b16 %v1165, %v1164
  %v1188 = vpack.c.b16 %v1167, %v1166
  %v1189 = vpack.c.b16 %v1169, %v1168
  %v1190 = vpack.c.b16 %v1171, %v1170
  %v1191 = vpack.c.b16 %v1173, %v1172
  %v1192 = vpack.c.b16 %v1175, %v1174
  %v1193 = vpack.c.b16 %v1177, %v1176
  %1210 = vmatpush.bf16.msra.mxu0 %v1185
  %1211 = vmatpush.bf16.msra.mxu0 %v1184
  %1212 = vmatpush.bf16.msra.mxu0 %v1183
  %1213 = vmatpush.bf16.msra.mxu0 %v1182
  %1214 = vmatpush.bf16.msra.mxu0 %v1181
  %1215 = vmatpush.bf16.msra.mxu0 %v1180
  %1216 = vmatpush.bf16.msra.mxu0 %v1179
  %1217 = vmatpush.bf16.msra.mxu0 %v1178
  %1218 = vmatmul.bf16.gmra.mxu0 %v1076
  %v1219 = vpop.f32.mrf.mxu0
  %v1220 = vadd.f32 %v1112, %v1219
  %v1221 = vpop.f32.mrf.mxu0
  %v1222 = vadd.f32 %v1112, %v1221
  %1223 = vdwg.mxu0
  %1224 = vmatpush.bf16.msra.mxu0 %v1193
  %1225 = vmatpush.bf16.msra.mxu0 %v1192
  %1226 = vmatpush.bf16.msra.mxu0 %v1191
  %1227 = vmatpush.bf16.msra.mxu0 %v1190
  %1228 = vmatpush.bf16.msra.mxu0 %v1189
  %1229 = vmatpush.bf16.msra.mxu0 %v1188
  %1230 = vmatpush.bf16.msra.mxu0 %v1187
  %1231 = vmatpush.bf16.msra.mxu0 %v1186
  %1232 = vmatmul.bf16.gmra.mxu0 %v1077
  %v1233 = vpop.f32.mrf.mxu0
  %v1234 = vadd.f32 %v1220, %v1233
  %v1235 = vpop.f32.mrf.mxu0
  %v1236 = vadd.f32 %v1222, %v1235
  %1237 = vdwg.mxu0
  %v1238 = vmax.f32 %v1234, 0.0
  %v1239 = vmax.f32 %v1236, 0.0
  %v1240 = vpack.c.bf16 %v1239, %v1238
  %v1241 = vld [vmem:[%s5] sm:$0xf]
  %v1242 = vld [vmem:[%s5 + $0x4] sm:$0xf]
  %v1243 = vld [vmem:[%s5 + $0x8] sm:$0xf]
  %v1244 = vld [vmem:[%s5 + $0xc] sm:$0xf]
  %v1245 = vld [vmem:[%s5 + $0x10] sm:$0xf]
  %v1246 = vld [vmem:[%s5 + $0x14] sm:$0xf]
  %v1247 = vld [vmem:[%s5 + $0x18] sm:$0xf]
  %v1248 = vld [vmem:[%s5 + $0x1c] sm:$0xf]
  %v1249 = vld [vmem:[%s5 + $0x20] sm:$0xf]
  %v1250 = vld [vmem:[%s5 + $0x24] sm:$0xf]
  %v1251 = vld [vmem:[%s5 + $0x28] sm:$0xf]
  %v1252 = vld [vmem:[%s5 + $0x2c] sm:$0xf]
  %v1253 = vld [vmem:[%s5 + $0x30] sm:$0xf]
  %v1254 = vld [vmem:[%s5 + $0x34] sm:$0xf]
  %v1255 = vld [vmem:[%s5 + $0x38] sm:$0xf]
  %v1256 = vld [vmem:[%s5 + $0x3c] sm:$0xf]
  %v1257 = vld [vmem:[%s6] sm:$0x1]
  %v1259 = vperm.slane %v1257, 0
  %v1277 = vunpack.c.l.b16 %v1241
  %v1278 = vunpack.c.l.b16 %v1242
  %v1279 = vunpack.c.l.b16 %v1243
  %v1280 = vunpack.c.l.b16 %v1244
  %v1281 = vunpack.c.l.b16 %v1245
  %v1282 = vunpack.c.l.b16 %v1246
  %v1283 = vunpack.c.l.b16 %v1247
  %v1284 = vunpack.c.l.b16 %v1248
  %v1285 = vunpack.c.l.b16 %v1249
  %v1286 = vunpack.c.l.b16 %v1250
  %v1287 = vunpack.c.l.b16 %v1251
  %v1288 = vunpack.c.l.b16 %v1252
  %v1289 = vunpack.c.l.b16 %v1253
  %v1290 = vunpack.c.l.b16 %v1254
  %v1291 = vunpack.c.l.b16 %v1255
  %v1292 = vunpack.c.l.b16 %v1256
  %v1293 = vpack.c.b16 %v1278, %v1277
  %v1294 = vpack.c.b16 %v1280, %v1279
  %v1295 = vpack.c.b16 %v1282, %v1281
  %v1296 = vpack.c.b16 %v1284, %v1283
  %v1297 = vpack.c.b16 %v1286, %v1285
  %v1298 = vpack.c.b16 %v1288, %v1287
  %v1299 = vpack.c.b16 %v1290, %v1289
  %v1300 = vpack.c.b16 %v1292, %v1291
  %1309 = vmatpush.bf16.msra.mxu0 %v1300
  %1310 = vmatpush.bf16.msra.mxu0 %v1299
  %1311 = vmatpush.bf16.msra.mxu0 %v1298
  %1312 = vmatpush.bf16.msra.mxu0 %v1297
  %1313 = vmatpush.bf16.msra.mxu0 %v1296
  %1314 = vmatpush.bf16.msra.mxu0 %v1295
  %1315 = vmatpush.bf16.msra.mxu0 %v1294
  %1316 = vmatpush.bf16.msra.mxu0 %v1293
  %1317 = vmatmul.bf16.gmra.mxu0 %v1240
  %v1318 = vpop.f32.mrf.mxu0
  %v1319 = vadd.f32 %v1259, %v1318
  %v1320 = vpop.f32.mrf.mxu0
  %v1321 = vadd.f32 %v1259, %v1320
  %1322 = vdwg.mxu0
  %1323 = vst [vmem:[%s7] sm:$0xff] %v1319
  %1324 = vst [vmem:[%s7 + $0x8] sm:$0xff] %v1321
  // Predicated region
  $region30: #{net_l2_forward.1} parent=0 // pred_check
    _
  $region31: #{net_l2_forward.1} parent=0 // pred_check_branch
    %1326 = sbr.rel (0) target = $region33
  $region32: #{net_l2_forward.1} parent=0 // pred_region
    _
  $region33: #{net_l2_forward.1} parent=0 // pred_fallthru
    _
  // Predicated region
  $region34: #{net_l2_forward.1} parent=0 // pred_check
    _
  $region35: #{net_l2_forward.1} parent=0 // pred_check_branch
    %1328 = sbr.rel (0) target = $region37
  $region36: #{net_l2_forward.1} parent=0 // pred_region
    _
  $region37: #{net_l2_forward.1} parent=0 // pred_fallthru
    _

</llo_original>
